<compile_context>
chip_gen: v7x
topology: tpu7x:2x2x1
jax: 0.10.0
libtpu: 0.0.40
codegen_flags: <defaults>
</compile_context>

<pallas_src>
import jax
import jax.numpy as jnp
from jax import lax
from jax.experimental import pallas as pl
from jax.experimental.pallas import tpu as pltpu


def _round_up(x, m):
    return (x + m - 1) // m * m


def _vmem_capacity_bytes():
    """Physical VMEM per TensorCore; conservative fallback if unknown."""
    try:
        info = pltpu.get_tpu_info()
        cap = getattr(info, "vmem_capacity_bytes", None)
        if cap:
            return int(cap)
    except Exception:
        pass
    return 64 * 1024 * 1024  # v7x has the smallest VMEM (64 MiB)


def _pick_n_tile(total, cap, align):
    """Largest multiple of `align` dividing `total` and <= cap (>= align)."""
    best = align
    t = align
    while t <= min(total, max(cap, align)):
        if total % t == 0:
            best = t
        t += align
    return best


def _pick_m_tile(M, cap):
    """Multiple-of-8 M tile minimising padded rows + per-grid-step overhead.

    Cost model: total padded rows (dead DMA + MXU work) plus ~300 rows worth
    of fixed per-grid-step overhead (~0.35us/step vs ~1ns/row of HBM time).
    """
    cap = max(8, cap)
    best_t, best_cost = 8, None
    t = 8
    while t <= cap:
        mp = _round_up(M, t)
        cost = mp + 300 * (mp // t)
        if best_cost is None or cost < best_cost or (cost == best_cost and t > best_t):
            best_t, best_cost = t, cost
        t += 8
    return best_t


def _working_set_bytes(tm, tn, kp, elt_in, elt_out):
    # Double-buffered (x2) input/output tiles + f32 bias row.
    return 2 * (tm * kp * elt_in + kp * tn * elt_in + tm * tn * elt_out + tn * 4)


def _select_tiles(M, Kp, Ep, elt_in, elt_out, vmem_target):
    """Generation-aware tile selection with a VMEM-fit feedback loop."""
    align_n = 256 if Ep % 256 == 0 else 128  # v6e/v7x MXU is 2x256x256
    tn_cap, tm_cap = Ep, 1024
    while True:
        tn = _pick_n_tile(Ep, tn_cap, align_n)
        tm = _pick_m_tile(M, tm_cap)
        fits = _working_set_bytes(tm, tn, Kp, elt_in, elt_out) <= vmem_target
        if fits or (tm_cap <= 64 and tn_cap <= align_n):
            break
        # Shrink whichever operand tile dominates the working set.
        if tm * Kp >= Kp * tn and tm_cap > 64:
            tm_cap = max(64, tm_cap // 2)
        elif tn_cap > align_n:
            tn_cap = max(align_n, tn_cap // 2)
        else:
            tm_cap = max(64, tm_cap // 2)
    # Guarantee >= 2 grid tiles so both v7x TensorCores get work.
    if (Ep // tn) * (_round_up(M, tm) // tm) < 2 and M >= 16:
        tm = _round_up((M + 1) // 2, 8)
    assert tm % 8 == 0, tm  # sublane divisibility of the (tm, Kp) block
    return tm, tn


def _patch_embed_kernel(x_ref, w_ref, b_ref, o_ref):
    # x_ref: (tm, Kp) im2col patch tile (compute dtype, bf16 by default)
    # w_ref: (Kp, tn) flattened conv weight
    # b_ref: (1, tn)  bias (f32)
    # o_ref: (tm, tn) output tile
    acc = jnp.dot(x_ref[...], w_ref[...], preferred_element_type=jnp.float32)
    o_ref[...] = (acc + b_ref[...]).astype(o_ref.dtype)


def patch_embed_forward(x, weight, bias, patch_size, *,
                        compute_dtype=jnp.bfloat16, output_format="nchw"):
    """Forward pass of PatchEmbed (nn.Conv2d with kernel_size == stride).

    x:      (B, C, H, W)   NCHW, like PyTorch.
    weight: (E, C, ph, pw) conv kernel, PyTorch OIHW layout.
    bias:   (E,) or None.
    compute_dtype: dtype of the MXU operands (default bf16; accumulation and
        the bias add are always f32). Use jnp.float32 for full conv parity.
    output_format:
        "nchw"   -> (B, E, H//ph, W//pw), exactly nn.Conv2d's output.
        "tokens" -> (B, (H//ph)*(W//pw), E); skips the NCHW output repack
                    (virtually every ViT flattens to tokens right after).
    """
    ph, pw = patch_size
    B, C, H, W = x.shape
    E = weight.shape[0]
    Hp, Wp = H // ph, W // pw
    M = B * Hp * Wp
    K = C * ph * pw

    out_dtype = x.dtype
    in_dtype = jnp.dtype(compute_dtype)
    elt_in = in_dtype.itemsize
    elt_out = jnp.dtype(out_dtype).itemsize

    if bias is None:
        bias = jnp.zeros((E,), jnp.float32)

    # ---- lane/sublane friendly padded sizes + generation-aware tiles -----
    Kp = _round_up(K, 128)
    Ep = _round_up(E, 128)
    vmem_cap = _vmem_capacity_bytes()
    tm, tn = _select_tiles(M, Kp, Ep, elt_in, elt_out, int(0.72 * vmem_cap))
    Mp = _round_up(M, tm)
    nm, nn = Mp // tm, Ep // tn

    # ---- im2col (single fused XLA reshape/transpose/cast/pad pass) -------
    # (B, C, H, W) -> (B, Hp, Wp, C, ph, pw) -> (M, K); K flattened in
    # (c, kh, kw) order to match the OIHW conv weight. Materialised once in
    # HBM at compute_dtype width (bf16 by default => half the old bytes).
    patches = x.reshape(B, C, Hp, ph, Wp, pw)
    patches = patches.transpose(0, 2, 4, 1, 3, 5).reshape(M, K).astype(in_dtype)
    patches = jnp.pad(patches, ((0, Mp - M), (0, Kp - K)))
    w_mat = weight.reshape(E, K).T.astype(in_dtype)              # (K, E)
    w_mat = jnp.pad(w_mat, ((0, Kp - K), (0, Ep - E)))
    b_mat = jnp.pad(bias.astype(jnp.float32).reshape(1, E), ((0, 0), (0, Ep - E)))

    # ---- grid-axis order: keep the bigger re-stream off the inner axis ----
    # The operand whose block index depends only on the OUTER grid axis is
    # fetched once; the one indexed by the inner axis is re-streamed every
    # outer step. (With a single tile on an axis Pallas skips the re-fetch
    # anyway, so either order is equivalent there.)
    m_innermost = (nn - 1) * Mp < (nm - 1) * Ep
    if m_innermost:
        grid = (nn, nm)
        patches_spec = pl.BlockSpec((tm, Kp), lambda j, i: (i, 0))
        w_spec = pl.BlockSpec((Kp, tn), lambda j, i: (0, j))
        b_spec = pl.BlockSpec((1, tn), lambda j, i: (0, j))
        out_spec = pl.BlockSpec((tm, tn), lambda j, i: (i, j))
        patches_bytes = nn * Mp * Kp * elt_in
        weight_bytes = Kp * Ep * elt_in
    else:
        grid = (nm, nn)
        patches_spec = pl.BlockSpec((tm, Kp), lambda i, j: (i, 0))
        w_spec = pl.BlockSpec((Kp, tn), lambda i, j: (0, j))
        b_spec = pl.BlockSpec((1, tn), lambda i, j: (0, j))
        out_spec = pl.BlockSpec((tm, tn), lambda i, j: (i, j))
        patches_bytes = Mp * Kp * elt_in
        weight_bytes = nm * Kp * Ep * elt_in

    working_set = _working_set_bytes(tm, tn, Kp, elt_in, elt_out)
    vmem_limit = int(min(max(working_set + 8 * 1024 * 1024, 32 * 1024 * 1024),
                         0.9 * vmem_cap))

    cost = pl.CostEstimate(
        flops=2 * Mp * Kp * Ep,
        transcendentals=0,
        bytes_accessed=patches_bytes + weight_bytes + Mp * Ep * elt_out + Ep * 4,
    )

    out_flat = pl.pallas_call(
        _patch_embed_kernel,
        out_shape=jax.ShapeDtypeStruct((Mp, Ep), out_dtype),
        grid_spec=pltpu.PrefetchScalarGridSpec(
            num_scalar_prefetch=0,
            grid=grid,
            in_specs=[patches_spec, w_spec, b_spec],
            out_specs=out_spec,
        ),
        compiler_params=pltpu.CompilerParams(
            dimension_semantics=("parallel", "parallel"),
            vmem_limit_bytes=vmem_limit,
        ),
        cost_estimate=cost,
    )(patches, w_mat, b_mat)

    out_flat = out_flat[:M, :E]                      # strip zero padding (exact)
    if output_format == "tokens":
        return out_flat.reshape(B, Hp * Wp, E)       # free reshape, no repack
    # NCHW like nn.Conv2d (costs one extra output read+write; prefer "tokens"
    # when the caller flattens to (B, N, E) anyway).
    return out_flat.reshape(B, Hp, Wp, E).transpose(0, 3, 1, 2)


if __name__ == "__main__":
    # Small, forward-consistent shapes:
    #   img_size=16, patch_size=4, in_chans=4, embed_dim=32, batch=2
    B, C, H, W = 2, 4, 16, 16
    ph, pw = 4, 4
    E = 32

    key = jax.random.PRNGKey(0)
    kx, kw_, kb = jax.random.split(key, 3)
    x = jax.random.normal(kx, (B, C, H, W), dtype=jnp.float32)
    weight = jax.random.normal(kw_, (E, C, ph, pw), dtype=jnp.float32) * 0.02
    bias = jax.random.normal(kb, (E,), dtype=jnp.float32) * 0.02

    # Reference: plain-JAX strided conv (same math as nn.Conv2d, k == stride).
    ref = lax.conv_general_dilated(
        x, weight, window_strides=(ph, pw), padding="VALID",
        dimension_numbers=("NCHW", "OIHW", "NCHW"),
    ) + bias.reshape(1, E, 1, 1)

    # f32-operand path: matches nn.Conv2d numerics.
    out_f32 = jax.block_until_ready(
        patch_embed_forward(x, weight, bias, (ph, pw), compute_dtype=jnp.float32))
    assert out_f32.shape == (B, E, H // ph, W // pw), out_f32.shape
    assert jnp.allclose(out_f32, ref, atol=1e-4, rtol=1e-4), "f32 path mismatch"

    # Default path: bf16 MXU operands, f32 accumulation (looser tolerance).
    out_bf16 = jax.block_until_ready(
        patch_embed_forward(x, weight, bias, (ph, pw)))
    assert out_bf16.shape == ref.shape, out_bf16.shape
    assert jnp.allclose(out_bf16, ref, atol=3e-2, rtol=3e-2), "bf16 path mismatch"

    # Token-layout output (skips the NCHW repack entirely).
    tokens = jax.block_until_ready(
        patch_embed_forward(x, weight, bias, (ph, pw), output_format="tokens"))
    assert tokens.shape == (B, (H // ph) * (W // pw), E), tokens.shape
    ref_tokens = ref.reshape(B, E, -1).transpose(0, 2, 1)
    assert jnp.allclose(tokens, ref_tokens, atol=3e-2, rtol=3e-2), "tokens mismatch"

    print("KERNEL_OK")
</pallas_src>

<mosaic_0001>
module attributes {stable_mosaic.version = 11 : i64} {
  func.func @_patch_embed_kernel(%arg0: i32, %arg1: i32, %arg2: memref<16x128xf32, #tpu.memory_space<vmem>>, %arg3: memref<128x128xf32, #tpu.memory_space<vmem>>, %arg4: memref<1x128xf32, #tpu.memory_space<vmem>>, %arg5: memref<16x128xf32, #tpu.memory_space<vmem>>) attributes {dimension_semantics = [#tpu.dimension_semantics<parallel>, #tpu.dimension_semantics<parallel>], iteration_bounds = array<i64: 1, 2>, scalar_prefetch = 0 : i64, scratch_operands = 0 : i64, tpu.core_type = #tpu.core_type<tc>, window_params = [{transform_indices = @transform_0, window_bounds = array<i64: 16, 128>}, {transform_indices = @transform_1, window_bounds = array<i64: 128, 128>}, {transform_indices = @transform_2, window_bounds = array<i64: 1, 128>}, {transform_indices = @transform_3, window_bounds = array<i64: 16, 128>}]} {
    %c0 = arith.constant 0 : index
    %c0_0 = arith.constant 0 : index
    %0 = vector.load %arg2[%c0, %c0_0] : memref<16x128xf32, #tpu.memory_space<vmem>>, vector<16x128xf32>
    %c0_1 = arith.constant 0 : index
    %c0_2 = arith.constant 0 : index
    %1 = vector.load %arg3[%c0_1, %c0_2] : memref<128x128xf32, #tpu.memory_space<vmem>>, vector<128x128xf32>
    %cst = arith.constant dense<0.000000e+00> : vector<16x128xf32>
    %2 = tpu.matmul %0, %1, %cst {dimension_numbers = #tpu.dot_dimension_numbers<[1], [0], [0], [1], [0, 0, 1, 1], [], []>} : vector<16x128xf32>, vector<128x128xf32>, vector<16x128xf32> -> vector<16x128xf32>
    %c0_3 = arith.constant 0 : index
    %c0_4 = arith.constant 0 : index
    %3 = vector.load %arg4[%c0_3, %c0_4] : memref<1x128xf32, #tpu.memory_space<vmem>>, vector<1x128xf32>
    %4 = vector.broadcast %3 : vector<1x128xf32> to vector<16x128xf32>
    %5 = arith.addf %2, %4 : vector<16x128xf32>
    %c0_5 = arith.constant 0 : index
    %c0_6 = arith.constant 0 : index
    %6 = vector.load %arg5[%c0_5, %c0_6] : memref<16x128xf32, #tpu.memory_space<vmem>>, vector<16x128xf32>
    tpu.vector_store %arg5[%c0_5, %c0_6], %5 {strides = array<i32>} : memref<16x128xf32, #tpu.memory_space<vmem>>, vector<16x128xf32>,
    return
  }
  func.func @transform_0(%arg0: i32, %arg1: i32) -> (i32, i32) {
    %c0_i32 = arith.constant 0 : i32
    %c0_i32_0 = arith.constant 0 : i32
    return %arg1, %c0_i32 : i32, i32
  }
  func.func @transform_1(%arg0: i32, %arg1: i32) -> (i32, i32) {
    %c0_i32 = arith.constant 0 : i32
    %c0_i32_0 = arith.constant 0 : i32
    return %c0_i32, %arg0 : i32, i32
  }
  func.func @transform_2(%arg0: i32, %arg1: i32) -> (i32, i32) {
    %c0_i32 = arith.constant 0 : i32
    %c0_i32_0 = arith.constant 0 : i32
    return %c0_i32, %arg0 : i32, i32
  }
  func.func @transform_3(%arg0: i32, %arg1: i32) -> (i32, i32) {
    %c0_i32 = arith.constant 0 : i32
    return %arg1, %arg0 : i32, i32
  }
}

</mosaic_0001>

<llo_original>
// kernel: tpu_custom_call.1
$region0: #{tpu_custom_call.1}
  #allocation0 [shape = 'u32[]', space=smem, size = 0x4, offset = 0x4, fixed_abs, tag = 'smem constant byte address 0x4 - core index']
  #allocation1 [shape = 'u32[144,128]{1,0:T(1,128)}', space=vmem, size = 0x12000, scoped, tag = 'internal scratch']
  %s0 = inlined_call_operand.hbm [shape: f32[32,128], index: 0, kind: input, shape index: {}]
  %s1 = inlined_call_operand.hbm [shape: f32[128,128], index: 1, kind: input, shape index: {}]
  %s2 = inlined_call_operand.vmem [shape: f32[1,128], index: 2, kind: input, shape index: {}]
  %s3 = inlined_call_operand.hbm [shape: f32[32,128], index: 3, kind: output, shape index: {}]
  %s4 = sld [smem:[#allocation0]]
  $region53: #{tpu_custom_call.1} parent=0
    _
  %s6 = ssub.s32 1, %s4
  %s7 = scalar_select 0, %s6, %s4
  $region1: #{tpu_custom_call.1} parent=0
    #allocation2 [shape = 'u8[16384]{0}', space=vmem, size = 0x4000, scoped, tag = 'input window, operand 0']
    #allocation3 [shape = 's32[2]{0}', space=sflag, size = 0x8, scoped, tag = 'scoped memory for tpu_custom_call.1']
    #allocation4 [shape = 's32[2]{0}', space=sflag, size = 0x8, scoped, tag = 'scoped memory for tpu_custom_call.1']
    #allocation5 [shape = 'u8[65536]{0}', space=vmem, size = 0x10000, scoped, tag = 'input window, operand 1, single buffered']
    #allocation6 [shape = 's32[1]{0}', space=sflag, size = 0x4, scoped, tag = 'scoped memory for tpu_custom_call.1']
    #allocation7 [shape = 'u8[16384]{0}', space=vmem, size = 0x4000, scoped, tag = 'output window, operand 0']
    %8 = vsyncpa [#allocation3], 0
    %s9 = scalar_lea.sflag [#allocation3], 1
    %10 = vsyncpa %s9, 0
    %11 = vsyncpa [#allocation6], 0
    %12 = vsyncpa [#allocation4], 0
    %s13 = scalar_lea.sflag [#allocation4], 1
    %14 = vsyncpa %s13, 0
    loop: start=0, step=1, limit=4
    $region2: #{tpu_custom_call.1} parent=1 // loop_pre_header
      _
    $region3: #{tpu_custom_call.1} parent=1 // loop_header
      %s16 = sphi 0, %s20
      %p17 = scmp.ge.s32.totalorder %s16, 4
      %s23 = sphi 0, %s35
      %s24 = sphi 0, %s31
      %s25 = sphi 0, %s23
      %s26 = sphi 0, %s24
      %s27 = sphi 0, %s25
      %s28 = sphi 0, %s26
      %s38 = sphi 0, %s40
      %s41 = sphi 0, %s38
      %s42 = sphi 0, %s41
      %s58 = sphi 0, %s42
      %s64 = sphi 0, %s66
      %s67 = sphi 0, %s64
      %s68 = sphi 0, %s67
      %s84 = sphi 0, %s68
      %s90 = sphi 0, %s92
      %s93 = sphi 0, %s90
      %s94 = sphi 0, %s93
      %s110 = sphi 0, %s94
      %s118 = sphi 0, %s120
      %s121 = sphi 0, %s118
      %s122 = sphi 0, %s121
      %s138 = sphi 0, %s122
    $region4: #{tpu_custom_call.1} parent=1 // loop_header_branch
      %19 = sbr.rel (%p17) target = $region8
    $region5: #{tpu_custom_call.1} parent=1 // loop_body
      %s21 = ssub.s32 %s16, 1
      %s22 = ssub.s32 %s16, 2
      %s29 = sadd.s32 1, %s24
      %p30 = scmp.ge.s32.totalorder %s29, 2
      %s31 = scalar_select %p30, 0, %s29
      %s32 = sadd.s32 1, %s23
      %s33 = scalar_select %p30, %s32, %s23
      %p34 = scmp.ge.s32.totalorder %s33, 1
      %s35 = scalar_select %p34, 0, %s33
      %s36 = ssub.s32 %s24, %s31
      %p37 = scmp.eq.s32.totalorder %s36, 0
      %s39 = sadd.s32 %s38, 1
      %s40 = scalar_select %p37, %s38, %s39
      %p43 = pneg %p37
      %p44 = scmp.eq.s32.totalorder %s16, 1
      %p45 = por %p43, %p44
      %p46 = scmp.ne.s32.totalorder %s38, %s41
      %p47 = scmp.eq.s32.totalorder %s16, 0
      %p48 = por %p46, %p47
      %p49 = scmp.ne.s32.totalorder %s38, %s41
      %p50 = scmp.eq.s32.totalorder %s21, 1
      %p51 = por %p49, %p50
      %p52 = scmp.ne.s32.totalorder %s41, %s42
      %p53 = scmp.eq.s32.totalorder %s21, 0
      %p54 = por %p52, %p53
      %p55 = scmp.ne.s32.totalorder %s41, %s42
      %p56 = scmp.eq.s32.totalorder %s22, 1
      %p57 = por %p55, %p56
      %p59 = scmp.ne.s32.totalorder %s42, %s58
      %p60 = scmp.eq.s32.totalorder %s22, 0
      %p61 = por %p59, %p60
      %s62 = ssub.s32 %s23, %s35
      %p63 = scmp.eq.s32.totalorder %s62, 0
      %s65 = sadd.s32 %s64, 1
      %s66 = scalar_select %p63, %s64, %s65
      %p69 = pneg %p63
      %p70 = scmp.eq.s32.totalorder %s16, 1
      %p71 = por %p69, %p70
      %p72 = scmp.ne.s32.totalorder %s64, %s67
      %p73 = scmp.eq.s32.totalorder %s16, 0
      %p74 = por %p72, %p73
      %p75 = scmp.ne.s32.totalorder %s64, %s67
      %p76 = scmp.eq.s32.totalorder %s21, 1
      %p77 = por %p75, %p76
      %p78 = scmp.ne.s32.totalorder %s67, %s68
      %p79 = scmp.eq.s32.totalorder %s21, 0
      %p80 = por %p78, %p79
      %p81 = scmp.ne.s32.totalorder %s67, %s68
      %p82 = scmp.eq.s32.totalorder %s22, 1
      %p83 = por %p81, %p82
      %p85 = scmp.ne.s32.totalorder %s68, %s84
      %p86 = scmp.eq.s32.totalorder %s22, 0
      %p87 = por %p85, %p86
      %s88 = ssub.s32 %s23, %s35
      %p89 = scmp.eq.s32.totalorder %s88, 0
      %s91 = sadd.s32 %s90, 1
      %s92 = scalar_select %p89, %s90, %s91
      %p95 = pneg %p89
      %p96 = scmp.eq.s32.totalorder %s16, 1
      %p97 = por %p95, %p96
      %p98 = scmp.ne.s32.totalorder %s90, %s93
      %p99 = scmp.eq.s32.totalorder %s16, 0
      %p100 = por %p98, %p99
      %p101 = scmp.ne.s32.totalorder %s90, %s93
      %p102 = scmp.eq.s32.totalorder %s21, 1
      %p103 = por %p101, %p102
      %p104 = scmp.ne.s32.totalorder %s93, %s94
      %p105 = scmp.eq.s32.totalorder %s21, 0
      %p106 = por %p104, %p105
      %p107 = scmp.ne.s32.totalorder %s93, %s94
      %p108 = scmp.eq.s32.totalorder %s22, 1
      %p109 = por %p107, %p108
      %p111 = scmp.ne.s32.totalorder %s94, %s110
      %p112 = scmp.eq.s32.totalorder %s22, 0
      %p113 = por %p111, %p112
      %s114 = ssub.s32 %s24, %s31
      %s115 = ssub.s32 %s23, %s35
      %s116 = sor.u32 %s114, %s115
      %p117 = scmp.eq.s32.totalorder %s116, 0
      %s119 = sadd.s32 %s118, 1
      %s120 = scalar_select %p117, %s118, %s119
      %p123 = pneg %p117
      %p124 = scmp.eq.s32.totalorder %s16, 1
      %p125 = por %p123, %p124
      %p126 = scmp.ne.s32.totalorder %s118, %s121
      %p127 = scmp.eq.s32.totalorder %s16, 0
      %p128 = por %p126, %p127
      %p129 = scmp.ne.s32.totalorder %s118, %s121
      %p130 = scmp.eq.s32.totalorder %s21, 1
      %p131 = por %p129, %p130
      %p132 = scmp.ne.s32.totalorder %s121, %s122
      %p133 = scmp.eq.s32.totalorder %s21, 0
      %p134 = por %p132, %p133
      %p135 = scmp.ne.s32.totalorder %s121, %s122
      %p136 = scmp.eq.s32.totalorder %s22, 1
      %p137 = por %p135, %p136
      %p139 = scmp.ne.s32.totalorder %s122, %s138
      %p140 = scmp.eq.s32.totalorder %s22, 0
      %p141 = por %p139, %p140
      %p142 = scmp.le.s32.totalorder 1, %s16
      %p143 = scmp.lt.s32.totalorder %s16, 3
      %p144 = pnand %p142, %p143
      %p145 = pneg %p144
      // Predicated region
      $region9: #{tpu_custom_call.1} parent=5 // pred_check
        _
      $region10: #{tpu_custom_call.1} parent=5 // pred_check_branch
        %147 = sbr.rel (%p144) target = $region12
      $region11: #{tpu_custom_call.1} parent=5 // pred_region
        %s148 = ssub.s32 %s16, 1
        // Predicated region
        $region13: #{tpu_custom_call.1} parent=11 // pred_check
          %p149 = pneg %p80
        $region14: #{tpu_custom_call.1} parent=11 // pred_check_branch
          %151 = sbr.rel (%p149) target = $region16
        $region15: #{tpu_custom_call.1} parent=11 // pred_region
          %s153 = ssub.s32 2048, 2048
          %154 = vsyncadd [#allocation6], %s153
          %s155 = smul.addr %s25, 128
          %s156 = scalar_lea.hbm %s1, %s155
          %s157 = sshll.u32 [#allocation5], 4
          %s158 = int_to_ptr.vmem [resolvable:$true] %s157
          %163 = dma.hbm_to_vmem [thread:$0]  %s156, 2048, %s158, [#allocation6], 128, 128, 8
        $region16: #{tpu_custom_call.1} parent=11 // pred_fallthru
          _
        // Predicated region
        $region17: #{tpu_custom_call.1} parent=11 // pred_check
          %p164 = pneg %p106
        $region18: #{tpu_custom_call.1} parent=11 // pred_check_branch
          %166 = sbr.rel (%p164) target = $region20
        $region19: #{tpu_custom_call.1} parent=11 // pred_region
          %p167 = scmp.lt.s32.totalorder %s25, 0
          %s168 = scalar_select %p167, %s25, 0
          %s169 = scalar_lea.vmem %s2, %s168
        $region20: #{tpu_custom_call.1} parent=11 // pred_fallthru
          _
      $region12: #{tpu_custom_call.1} parent=5 // pred_fallthru
        _
      %p170 = scmp.lt.s32.totalorder %s16, 2
      // Predicated region
      $region21: #{tpu_custom_call.1} parent=5 // pred_check
        %p171 = pneg %p170
      $region22: #{tpu_custom_call.1} parent=5 // pred_check_branch
        %173 = sbr.rel (%p171) target = $region24
      $region23: #{tpu_custom_call.1} parent=5 // pred_region
        // Predicated region
        $region25: #{tpu_custom_call.1} parent=23 // pred_check
          %p174 = pneg %p48
        $region26: #{tpu_custom_call.1} parent=23 // pred_check_branch
          %176 = sbr.rel (%p174) target = $region28
        $region27: #{tpu_custom_call.1} parent=23 // pred_region
          %s177 = sand.u32 %s38, 1
          %s178 = scalar_lea.sflag [#allocation3], %s177
          %s179 = sand.u32 %s38, 1
          %s180 = smul.addr %s179, 16
          %s181 = scalar_lea.vmem [#allocation2], %s180
          %s182 = smul.u32 2, %s24
          %s184 = ssub.s32 256, 256
          %185 = vsyncadd %s178, %s184
          %s186 = smul.addr %s182, 128
          %s187 = scalar_lea.hbm %s0, %s186
          %s188 = sshll.u32 %s181, 4
          %s189 = int_to_ptr.vmem [resolvable:$true] %s188
          %194 = dma.hbm_to_vmem [thread:$0]  %s187, 256, %s189, %s178, 128, 128, 8
        $region28: #{tpu_custom_call.1} parent=23 // pred_fallthru
          _
      $region24: #{tpu_custom_call.1} parent=5 // pred_fallthru
        _
      %p195 = scmp.le.s32.totalorder 1, %s16
      %p196 = scmp.lt.s32.totalorder %s16, 3
      %p197 = pnand %p195, %p196
      %p198 = pneg %p197
      // Predicated region
      $region29: #{tpu_custom_call.1} parent=5 // pred_check
        _
      $region30: #{tpu_custom_call.1} parent=5 // pred_check_branch
        %200 = sbr.rel (%p197) target = $region32
      $region31: #{tpu_custom_call.1} parent=5 // pred_region
        %s201 = ssub.s32 %s16, 1
        %s202 = sand.u32 %s41, 1
        %s203 = scalar_lea.sflag [#allocation3], %s202
        %s204 = sand.u32 %s41, 1
        %s205 = smul.addr %s204, 16
        %s206 = scalar_lea.vmem [#allocation2], %s205
        // Predicated region
        $region33: #{tpu_custom_call.1} parent=31 // pred_check
          %p207 = pneg %p54
        $region34: #{tpu_custom_call.1} parent=31 // pred_check_branch
          %209 = sbr.rel (%p207) target = $region36
        $region35: #{tpu_custom_call.1} parent=31 // pred_region
          %210 = dma.done %s203, 256
        $region36: #{tpu_custom_call.1} parent=31 // pred_fallthru
          _
        // Predicated region
        $region37: #{tpu_custom_call.1} parent=31 // pred_check
          %p211 = pneg %p80
        $region38: #{tpu_custom_call.1} parent=31 // pred_check_branch
          %213 = sbr.rel (%p211) target = $region40
        $region39: #{tpu_custom_call.1} parent=31 // pred_region
          %214 = dma.done [#allocation6], 2048
        $region40: #{tpu_custom_call.1} parent=31 // pred_fallthru
          _
        %s215 = sand.u32 %s41, 1
        %s216 = scalar_lea.sflag [#allocation3], %s215
        %s217 = sand.u32 %s41, 1
        %s218 = smul.addr %s217, 16
        %s219 = scalar_lea.vmem [#allocation2], %s218
        %p220 = pneg %p54
        %p221 = pneg %p51
        %p222 = pneg %p80
        %p223 = pneg %p77
        %p224 = scmp.lt.s32.totalorder %s25, 0
        %s225 = scalar_select %p224, %s25, 0
        %s226 = scalar_lea.vmem %s2, %s225
        %p227 = pneg %p106
        %p228 = pneg %p103
        %p229 = pneg %p134
        %p230 = pneg %p131
        %s231 = sand.u32 %s121, 1
        %s232 = scalar_lea.sflag [#allocation4], %s231
        %s233 = sand.u32 %s121, 1
        %s234 = smul.addr %s233, 16
        %s235 = scalar_lea.vmem [#allocation7], %s234
        %s236 = smul.u32 2, %s26
        %p237 = scmp.lt.s32.totalorder %s25, 0
        %s238 = scalar_select %p237, %s25, 0
        %s239 = scalar_lea.vmem %s2, %s238
        %s240 = smul.u32 2, %s26
        %v241 = vld [vmem:[%s206] sm:$0xff]
        %v242 = vld [vmem:[%s206 + $0x8] sm:$0xff]
        %v243 = vld [vmem:[#allocation5] sm:$0xff]
        %v244 = vld [vmem:[#allocation5 + $0x8] sm:$0xff]
        %v245 = vld [vmem:[#allocation5 + $0x10] sm:$0xff]
        %v246 = vld [vmem:[#allocation5 + $0x18] sm:$0xff]
        %v247 = vld [vmem:[#allocation5 + $0x20] sm:$0xff]
        %v248 = vld [vmem:[#allocation5 + $0x28] sm:$0xff]
        %v249 = vld [vmem:[#allocation5 + $0x30] sm:$0xff]
        %v250 = vld [vmem:[#allocation5 + $0x38] sm:$0xff]
        %v251 = vld [vmem:[#allocation5 + $0x40] sm:$0xff]
        %v252 = vld [vmem:[#allocation5 + $0x48] sm:$0xff]
        %v253 = vld [vmem:[#allocation5 + $0x50] sm:$0xff]
        %v254 = vld [vmem:[#allocation5 + $0x58] sm:$0xff]
        %v255 = vld [vmem:[#allocation5 + $0x60] sm:$0xff]
        %v256 = vld [vmem:[#allocation5 + $0x68] sm:$0xff]
        %v257 = vld [vmem:[#allocation5 + $0x70] sm:$0xff]
        %v258 = vld [vmem:[#allocation5 + $0x78] sm:$0xff]
        %v259 = vld [vmem:[%s239] sm:$0x1]
        %v261 = vlaneseq
        %v262 = vshrl.u32 %v261, 7
        %v263 = vsub.s32 0, %v262
        %v264 = vrot.slane %v259, %v263
        %266 = vmatprep.subr.mxu0 0.0
        %267 = vmatpush1.msra.mxu0 %v243
        %268 = vmatprep.subr.mxu0 0.0
        %269 = vmatpush1.msra.mxu0 %v244
        %270 = vmatprep.subr.mxu0 0.0
        %271 = vmatpush1.msra.mxu0 %v245
        %272 = vmatprep.subr.mxu0 0.0
        %273 = vmatpush1.msra.mxu0 %v246
        %274 = vmatprep.subr.mxu0 0.0
        %275 = vmatpush1.msra.mxu0 %v247
        %276 = vmatprep.subr.mxu0 0.0
        %277 = vmatpush1.msra.mxu0 %v248
        %278 = vmatprep.subr.mxu0 0.0
        %279 = vmatpush1.msra.mxu0 %v249
        %280 = vmatprep.subr.mxu0 0.0
        %281 = vmatpush1.msra.mxu0 %v250
        %282 = vmatprep.subr.mxu0 0.0
        %283 = vmatpush1.msra.mxu0 %v251
        %284 = vmatprep.subr.mxu0 0.0
        %285 = vmatpush1.msra.mxu0 %v252
        %286 = vmatprep.subr.mxu0 0.0
        %287 = vmatpush1.msra.mxu0 %v253
        %288 = vmatprep.subr.mxu0 0.0
        %289 = vmatpush1.msra.mxu0 %v254
        %290 = vmatprep.subr.mxu0 0.0
        %291 = vmatpush1.msra.mxu0 %v255
        %292 = vmatprep.subr.mxu0 0.0
        %293 = vmatpush1.msra.mxu0 %v256
        %294 = vmatprep.subr.mxu0 0.0
        %295 = vmatpush1.msra.mxu0 %v257
        %296 = vmatprep.subr.mxu0 0.0
        %297 = vmatpush1.msra.mxu0 %v258
        %298 = vmatprep.subr.mxu0 0.0
        %299 = vmatpush1.msra.mxu0 0.0
        %300 = vmatprep.subr.mxu0 0.0
        %301 = vmatpush1.msra.mxu0 0.0
        %302 = vmatprep.subr.mxu0 0.0
        %303 = vmatpush1.msra.mxu0 0.0
        %304 = vmatprep.subr.mxu0 0.0
        %305 = vmatpush1.msra.mxu0 0.0
        %306 = vmatprep.subr.mxu0 0.0
        %307 = vmatpush1.msra.mxu0 0.0
        %308 = vmatprep.subr.mxu0 0.0
        %309 = vmatpush1.msra.mxu0 0.0
        %310 = vmatprep.subr.mxu0 0.0
        %311 = vmatpush1.msra.mxu0 0.0
        %312 = vmatprep.subr.mxu0 0.0
        %313 = vmatpush1.msra.mxu0 0.0
        %314 = vmatprep.subr.mxu0 0.0
        %315 = vmatpush1.msra.mxu0 0.0
        %316 = vmatprep.subr.mxu0 0.0
        %317 = vmatpush1.msra.mxu0 0.0
        %318 = vmatprep.subr.mxu0 0.0
        %319 = vmatpush1.msra.mxu0 0.0
        %320 = vmatprep.subr.mxu0 0.0
        %321 = vmatpush1.msra.mxu0 0.0
        %322 = vmatprep.subr.mxu0 0.0
        %323 = vmatpush1.msra.mxu0 0.0
        %324 = vmatprep.subr.mxu0 0.0
        %325 = vmatpush1.msra.mxu0 0.0
        %326 = vmatprep.subr.mxu0 0.0
        %327 = vmatpush1.msra.mxu0 0.0
        %328 = vmatprep.subr.mxu0 0.0
        %329 = vmatpush1.msra.mxu0 0.0
        %330 = vmatprep.mubr.f32.mxu0 0.0
        %331 = vmatmul.mubr.f32.gmra.mrb[0].mxu0 %v241
        %v332 = vpop.f32.mrb[0].mxu0
        %v333 = vadd.f32 %v264, %v332
        %v334 = vpop.f32.mrb[0].mxu0
        %335 = vmatprep.mubr.f32.mxu0 0.0
        %336 = vmatmul.mubr.f32.gmra.mrb[0].mxu0 %v242
        %v337 = vpop.f32.mrb[0].mxu0
        %v338 = vadd.f32 %v264, %v337
        %v339 = vpop.f32.mrb[0].mxu0
        %340 = vdwg.mxu0
        %341 = vst [vmem:[%s235] sm:$0xff] %v333
        %342 = vst [vmem:[%s235 + $0x8] sm:$0xff] %v338
        %s343 = sand.u32 %s121, 1
        %s344 = scalar_lea.sflag [#allocation4], %s343
        %s345 = sand.u32 %s121, 1
        %s346 = smul.addr %s345, 16
        %s347 = scalar_lea.vmem [#allocation7], %s346
        // Predicated region
        $region41: #{tpu_custom_call.1} parent=31 // pred_check
          %p348 = pneg %p131
        $region42: #{tpu_custom_call.1} parent=31 // pred_check_branch
          %350 = sbr.rel (%p348) target = $region44
        $region43: #{tpu_custom_call.1} parent=31 // pred_region
          %s351 = smul.u32 2, %s26
          %s353 = ssub.s32 256, 256
          %354 = vsyncadd %s344, %s353
          %s355 = sadd.s32 %s25, %s351
          %s356 = smul.addr %s355, 128
          %s357 = scalar_lea.hbm %s3, %s356
          %s358 = sshll.u32 %s347, 4
          %s359 = int_to_ptr.vmem [resolvable:$true] %s358
          %364 = dma.vmem_to_hbm [thread:$0]  %s359, 256, %s357, %s344, 128, 128, 8
        $region44: #{tpu_custom_call.1} parent=31 // pred_fallthru
          _
      $region32: #{tpu_custom_call.1} parent=5 // pred_fallthru
        _
      %p365 = scmp.le.s32.totalorder 2, %s16
      // Predicated region
      $region45: #{tpu_custom_call.1} parent=5 // pred_check
        %p366 = pneg %p365
      $region46: #{tpu_custom_call.1} parent=5 // pred_check_branch
        %368 = sbr.rel (%p366) target = $region48
      $region47: #{tpu_custom_call.1} parent=5 // pred_region
        %s369 = ssub.s32 %s16, 2
        // Predicated region
        $region49: #{tpu_custom_call.1} parent=47 // pred_check
          %p370 = pneg %p137
        $region50: #{tpu_custom_call.1} parent=47 // pred_check_branch
          %372 = sbr.rel (%p370) target = $region52
        $region51: #{tpu_custom_call.1} parent=47 // pred_region
          %s373 = sand.u32 %s122, 1
          %s374 = scalar_lea.sflag [#allocation4], %s373
          %s375 = sand.u32 %s122, 1
          %s376 = smul.addr %s375, 16
          %s377 = scalar_lea.vmem [#allocation7], %s376
          %378 = dma.done %s374, 256
        $region52: #{tpu_custom_call.1} parent=47 // pred_fallthru
          _
      $region48: #{tpu_custom_call.1} parent=5 // pred_fallthru
        _
    $region6: #{tpu_custom_call.1} parent=1 // loop_footer
      %s20 = sadd.s32 1, %s16
    $region7: #{tpu_custom_call.1} parent=1 // loop_footer_branch
      %15 = sbr.rel target = $region3
    $region8: #{tpu_custom_call.1} parent=1 // loop_exit
      _
    %379 = vsyncpa [#allocation3], 1
    %s380 = scalar_lea.sflag [#allocation3], 1
    %381 = vsyncpa %s380, 1
    %382 = vsyncpa [#allocation6], 1
    %383 = vsyncpa [#allocation4], 1
    %s384 = scalar_lea.sflag [#allocation4], 1
    %385 = vsyncpa %s384, 1

</llo_original>
